<compile_context>
chip_gen: v7x
topology: tpu7x:2x2x1
jax: 0.10.0
libtpu: 0.0.40
codegen_flags: <defaults>
</compile_context>

<pallas_src>
import functools
import numpy as np
import jax
import jax.numpy as jnp
from jax.experimental import pallas as pl
from jax.experimental.pallas import tpu as pltpu


def _round_up(x, m):
    return ((x + m - 1) // m) * m


def adaptation_kernel(x_ref, wh_ref, bh_ref, wall_ref, ball_ref, out_ref, *,
                      n_o, dr_pad):
    # hidden = relu(x @ Wh + bh)  -- [tile_n, Dh_pad], f32 MXU accumulation.
    h = jnp.dot(x_ref[...], wh_ref[...],
                preferred_element_type=jnp.float32) + bh_ref[...]
    h = jnp.maximum(h, 0.0)
    # All heads in one MXU matmul: [tile_n, Dh_pad] @ [Dh_pad, n_o*Dr_pad].
    y = jnp.dot(h, wall_ref[...],
                preferred_element_type=jnp.float32) + ball_ref[...]
    # Head-major output (n_o, tile_n, Dr_pad): each per-head slab is a static,
    # 128-lane-aligned slice of y -> unmasked stores, no XLU transpose, and no
    # post-kernel HBM permutation pass.
    for head in range(n_o):
        out_ref[head] = y[:, head * dr_pad:(head + 1) * dr_pad].astype(out_ref.dtype)


def prepare_params(wh, bh, w_heads, b_heads):
    """One-time parameter prep (hoisted out of the per-call path).

    Zero-pads every lane dimension to a multiple of 128 and column-stacks the
    per-head weights into a single W_all so the whole forward is two matmuls.
    """
    dim_in, dim_hidden = wh.shape
    n_o, _, dim_range = w_heads.shape
    d_in_p = _round_up(dim_in, 128)
    d_h_p = _round_up(dim_hidden, 128)
    d_r_p = _round_up(dim_range, 128)

    wh_p = jnp.zeros((d_in_p, d_h_p), jnp.float32).at[:dim_in, :dim_hidden].set(wh)
    bh_p = jnp.zeros((1, d_h_p), jnp.float32).at[:, :dim_hidden].set(bh)

    # W_all[:, h*Dr_pad:(h+1)*Dr_pad] = zero-padded weight of head h.
    w_all = jnp.zeros((n_o, d_h_p, d_r_p), jnp.float32)
    w_all = w_all.at[:, :dim_hidden, :dim_range].set(w_heads)
    w_all = jnp.transpose(w_all, (1, 0, 2)).reshape(d_h_p, n_o * d_r_p)

    b_all = jnp.zeros((n_o, 1, d_r_p), jnp.float32)
    b_all = b_all.at[:, :, :dim_range].set(b_heads).reshape(1, n_o * d_r_p)
    return wh_p, bh_p, w_all, b_all


def adaptation_forward(x, wh_p, bh_p, w_all, b_all, *, dim_outs, dim_range):
    n, dim_in = x.shape
    d_in_p, d_h_p = wh_p.shape
    n_o = int(np.prod(dim_outs))
    d_r_p = w_all.shape[1] // n_o
    dr_all = n_o * d_r_p

    # Batch padding / tiling: at least 8 f32 rows per sublane granule; the grid
    # over batch tiles keeps the weights resident (index_map -> (0, 0)).
    tile_n = min(_round_up(n, 8), 128)
    n_pad = _round_up(n, tile_n)
    x_p = jnp.zeros((n_pad, d_in_p), jnp.float32).at[:n, :dim_in].set(x)

    grid = (n_pad // tile_n,)
    flops = 2 * n_pad * d_in_p * d_h_p + 2 * n_pad * d_h_p * dr_all
    bytes_accessed = 4 * (x_p.size + wh_p.size + bh_p.size +
                          w_all.size + b_all.size + n_o * n_pad * d_r_p)

    out = pl.pallas_call(
        functools.partial(adaptation_kernel, n_o=n_o, dr_pad=d_r_p),
        out_shape=jax.ShapeDtypeStruct((n_o, n_pad, d_r_p), jnp.float32),
        grid_spec=pltpu.PrefetchScalarGridSpec(
            num_scalar_prefetch=0,
            grid=grid,
            in_specs=[
                pl.BlockSpec((tile_n, d_in_p), lambda i: (i, 0)),   # x tile
                pl.BlockSpec((d_in_p, d_h_p), lambda i: (0, 0)),    # Wh (resident)
                pl.BlockSpec((1, d_h_p), lambda i: (0, 0)),         # bh (resident)
                pl.BlockSpec((d_h_p, dr_all), lambda i: (0, 0)),    # W_all (resident)
                pl.BlockSpec((1, dr_all), lambda i: (0, 0)),        # b_all (resident)
            ],
            out_specs=pl.BlockSpec((n_o, tile_n, d_r_p), lambda i: (0, i, 0)),
        ),
        compiler_params=pltpu.CompilerParams(
            dimension_semantics=("parallel",)),
        cost_estimate=pl.CostEstimate(flops=flops, transcendentals=0,
                                      bytes_accessed=bytes_accessed),
    )(x_p, wh_p, bh_p, w_all, b_all)

    # Strip the zero padding; the kernel output is already head-major
    # (== torch.cat(dim=0) order), so only reshapes remain -- no transpose.
    cat = out[:, :n, :dim_range].reshape(n_o * n, dim_range)
    return cat.reshape((n,) + tuple(dim_outs) + (dim_range,))


def reference(x, wh, bh, w_heads, b_heads, dim_outs):
    h = jnp.maximum(x @ wh + bh, 0.0)
    outs = [h @ w_heads[i] + b_heads[i] for i in range(w_heads.shape[0])]
    cat = jnp.concatenate(outs, axis=0)
    return cat.reshape((x.shape[0],) + tuple(dim_outs) + (w_heads.shape[2],))


if __name__ == "__main__":
    # Small shapes consistent with the module.
    N = 2            # batch (len(x))
    DIM_IN = 16
    DIM_HIDDEN = 32
    DIM_RANGE = 8
    DIM_OUTS = (2, 3)
    N_O = int(np.prod(DIM_OUTS))

    key = jax.random.PRNGKey(0)
    kx, kwh, kbh, kwo, kbo = jax.random.split(key, 5)

    x = jax.random.normal(kx, (N, DIM_IN), dtype=jnp.float32)
    # hidden Linear params (stored pre-transposed: [D_in, D_hidden])
    wh = 0.1 * jax.random.normal(kwh, (DIM_IN, DIM_HIDDEN), dtype=jnp.float32)
    bh = 0.1 * jax.random.normal(kbh, (1, DIM_HIDDEN), dtype=jnp.float32)
    # head Linear params, stacked: [n_o, D_hidden, D_range], biases [n_o, 1, D_range]
    w_heads = 0.1 * jax.random.normal(kwo, (N_O, DIM_HIDDEN, DIM_RANGE),
                                      dtype=jnp.float32)
    b_heads = 0.1 * jax.random.normal(kbo, (N_O, 1, DIM_RANGE),
                                      dtype=jnp.float32)

    # One-time parameter prep (== param init in the real model).
    params = jax.block_until_ready(prepare_params(wh, bh, w_heads, b_heads))
    wh_p, bh_p, w_all, b_all = params

    fwd = jax.jit(functools.partial(adaptation_forward,
                                    dim_outs=DIM_OUTS, dim_range=DIM_RANGE))
    out = jax.block_until_ready(fwd(x, wh_p, bh_p, w_all, b_all))

    ref = reference(x, wh, bh, w_heads, b_heads, DIM_OUTS)
    assert out.shape == (N,) + DIM_OUTS + (DIM_RANGE,), out.shape
    np.testing.assert_allclose(np.asarray(out), np.asarray(ref),
                               rtol=1e-5, atol=1e-5)
    print("KERNEL_OK")
</pallas_src>

<mosaic_0001>
module attributes {stable_mosaic.version = 11 : i64} {
  func.func @adaptation_kernel(%arg0: i32, %arg1: memref<8x128xf32, #tpu.memory_space<vmem>>, %arg2: memref<128x128xf32, #tpu.memory_space<vmem>>, %arg3: memref<1x128xf32, #tpu.memory_space<vmem>>, %arg4: memref<128x768xf32, #tpu.memory_space<vmem>>, %arg5: memref<1x768xf32, #tpu.memory_space<vmem>>, %arg6: memref<6x8x128xf32, #tpu.memory_space<vmem>>) attributes {dimension_semantics = [#tpu.dimension_semantics<parallel>], iteration_bounds = array<i64: 1>, scalar_prefetch = 0 : i64, scratch_operands = 0 : i64, tpu.core_type = #tpu.core_type<tc>, window_params = [{transform_indices = @transform_0, window_bounds = array<i64: 8, 128>}, {pipeline_mode = #tpu.pipeline_mode<synchronous>, transform_indices = @transform_1, window_bounds = array<i64: 128, 128>}, {pipeline_mode = #tpu.pipeline_mode<synchronous>, transform_indices = @transform_2, window_bounds = array<i64: 1, 128>}, {pipeline_mode = #tpu.pipeline_mode<synchronous>, transform_indices = @transform_3, window_bounds = array<i64: 128, 768>}, {pipeline_mode = #tpu.pipeline_mode<synchronous>, transform_indices = @transform_4, window_bounds = array<i64: 1, 768>}, {transform_indices = @transform_5, window_bounds = array<i64: 6, 8, 128>}]} {
    %c0 = arith.constant 0 : index
    %c0_0 = arith.constant 0 : index
    %0 = vector.load %arg1[%c0, %c0_0] : memref<8x128xf32, #tpu.memory_space<vmem>>, vector<8x128xf32>
    %c0_1 = arith.constant 0 : index
    %c0_2 = arith.constant 0 : index
    %1 = vector.load %arg2[%c0_1, %c0_2] : memref<128x128xf32, #tpu.memory_space<vmem>>, vector<128x128xf32>
    %cst = arith.constant dense<0.000000e+00> : vector<8x128xf32>
    %2 = tpu.matmul %0, %1, %cst {dimension_numbers = #tpu.dot_dimension_numbers<[1], [0], [0], [1], [0, 0, 1, 1], [], []>} : vector<8x128xf32>, vector<128x128xf32>, vector<8x128xf32> -> vector<8x128xf32>
    %c0_3 = arith.constant 0 : index
    %c0_4 = arith.constant 0 : index
    %3 = vector.load %arg3[%c0_3, %c0_4] : memref<1x128xf32, #tpu.memory_space<vmem>>, vector<1x128xf32>
    %4 = vector.broadcast %3 : vector<1x128xf32> to vector<8x128xf32>
    %5 = arith.addf %2, %4 : vector<8x128xf32>
    %cst_5 = arith.constant 0.000000e+00 : f32
    %6 = vector.broadcast %cst_5 : f32 to vector<8x128xf32>
    %7 = arith.maximumf %5, %6 : vector<8x128xf32>
    %c0_6 = arith.constant 0 : index
    %c0_7 = arith.constant 0 : index
    %8 = vector.load %arg4[%c0_6, %c0_7] : memref<128x768xf32, #tpu.memory_space<vmem>>, vector<128x768xf32>
    %cst_8 = arith.constant dense<0.000000e+00> : vector<8x768xf32>
    %9 = tpu.matmul %7, %8, %cst_8 {dimension_numbers = #tpu.dot_dimension_numbers<[1], [0], [0], [1], [0, 0, 1, 1], [], []>} : vector<8x128xf32>, vector<128x768xf32>, vector<8x768xf32> -> vector<8x768xf32>
    %c0_9 = arith.constant 0 : index
    %c0_10 = arith.constant 0 : index
    %10 = vector.load %arg5[%c0_9, %c0_10] : memref<1x768xf32, #tpu.memory_space<vmem>>, vector<1x768xf32>
    %11 = vector.broadcast %10 : vector<1x768xf32> to vector<8x768xf32>
    %12 = arith.addf %9, %11 : vector<8x768xf32>
    %13 = vector.extract_strided_slice %12 {offsets = [0, 0], sizes = [8, 128], strides = [1, 1]} : vector<8x768xf32> to vector<8x128xf32>
    %c0_11 = arith.constant 0 : index
    %c0_12 = arith.constant 0 : index
    %c0_13 = arith.constant 0 : index
    %14 = vector.load %arg6[%c0_11, %c0_12, %c0_13] : memref<6x8x128xf32, #tpu.memory_space<vmem>>, vector<1x8x128xf32>
    %15 = vector.shape_cast %14 : vector<1x8x128xf32> to vector<8x128xf32>
    %16 = vector.shape_cast %13 : vector<8x128xf32> to vector<1x8x128xf32>
    tpu.vector_store %arg6[%c0_11, %c0_12, %c0_13], %16 {strides = array<i32>} : memref<6x8x128xf32, #tpu.memory_space<vmem>>, vector<1x8x128xf32>,
    %17 = vector.extract_strided_slice %12 {offsets = [0, 128], sizes = [8, 128], strides = [1, 1]} : vector<8x768xf32> to vector<8x128xf32>
    %c1 = arith.constant 1 : index
    %c0_14 = arith.constant 0 : index
    %c0_15 = arith.constant 0 : index
    %18 = vector.load %arg6[%c1, %c0_14, %c0_15] : memref<6x8x128xf32, #tpu.memory_space<vmem>>, vector<1x8x128xf32>
    %19 = vector.shape_cast %18 : vector<1x8x128xf32> to vector<8x128xf32>
    %20 = vector.shape_cast %17 : vector<8x128xf32> to vector<1x8x128xf32>
    tpu.vector_store %arg6[%c1, %c0_14, %c0_15], %20 {strides = array<i32>} : memref<6x8x128xf32, #tpu.memory_space<vmem>>, vector<1x8x128xf32>,
    %21 = vector.extract_strided_slice %12 {offsets = [0, 256], sizes = [8, 128], strides = [1, 1]} : vector<8x768xf32> to vector<8x128xf32>
    %c2 = arith.constant 2 : index
    %c0_16 = arith.constant 0 : index
    %c0_17 = arith.constant 0 : index
    %22 = vector.load %arg6[%c2, %c0_16, %c0_17] : memref<6x8x128xf32, #tpu.memory_space<vmem>>, vector<1x8x128xf32>
    %23 = vector.shape_cast %22 : vector<1x8x128xf32> to vector<8x128xf32>
    %24 = vector.shape_cast %21 : vector<8x128xf32> to vector<1x8x128xf32>
    tpu.vector_store %arg6[%c2, %c0_16, %c0_17], %24 {strides = array<i32>} : memref<6x8x128xf32, #tpu.memory_space<vmem>>, vector<1x8x128xf32>,
    %25 = vector.extract_strided_slice %12 {offsets = [0, 384], sizes = [8, 128], strides = [1, 1]} : vector<8x768xf32> to vector<8x128xf32>
    %c3 = arith.constant 3 : index
    %c0_18 = arith.constant 0 : index
    %c0_19 = arith.constant 0 : index
    %26 = vector.load %arg6[%c3, %c0_18, %c0_19] : memref<6x8x128xf32, #tpu.memory_space<vmem>>, vector<1x8x128xf32>
    %27 = vector.shape_cast %26 : vector<1x8x128xf32> to vector<8x128xf32>
    %28 = vector.shape_cast %25 : vector<8x128xf32> to vector<1x8x128xf32>
    tpu.vector_store %arg6[%c3, %c0_18, %c0_19], %28 {strides = array<i32>} : memref<6x8x128xf32, #tpu.memory_space<vmem>>, vector<1x8x128xf32>,
    %29 = vector.extract_strided_slice %12 {offsets = [0, 512], sizes = [8, 128], strides = [1, 1]} : vector<8x768xf32> to vector<8x128xf32>
    %c4 = arith.constant 4 : index
    %c0_20 = arith.constant 0 : index
    %c0_21 = arith.constant 0 : index
    %30 = vector.load %arg6[%c4, %c0_20, %c0_21] : memref<6x8x128xf32, #tpu.memory_space<vmem>>, vector<1x8x128xf32>
    %31 = vector.shape_cast %30 : vector<1x8x128xf32> to vector<8x128xf32>
    %32 = vector.shape_cast %29 : vector<8x128xf32> to vector<1x8x128xf32>
    tpu.vector_store %arg6[%c4, %c0_20, %c0_21], %32 {strides = array<i32>} : memref<6x8x128xf32, #tpu.memory_space<vmem>>, vector<1x8x128xf32>,
    %33 = vector.extract_strided_slice %12 {offsets = [0, 640], sizes = [8, 128], strides = [1, 1]} : vector<8x768xf32> to vector<8x128xf32>
    %c5 = arith.constant 5 : index
    %c0_22 = arith.constant 0 : index
    %c0_23 = arith.constant 0 : index
    %34 = vector.load %arg6[%c5, %c0_22, %c0_23] : memref<6x8x128xf32, #tpu.memory_space<vmem>>, vector<1x8x128xf32>
    %35 = vector.shape_cast %34 : vector<1x8x128xf32> to vector<8x128xf32>
    %36 = vector.shape_cast %33 : vector<8x128xf32> to vector<1x8x128xf32>
    tpu.vector_store %arg6[%c5, %c0_22, %c0_23], %36 {strides = array<i32>} : memref<6x8x128xf32, #tpu.memory_space<vmem>>, vector<1x8x128xf32>,
    return
  }
  func.func @transform_0(%arg0: i32) -> (i32, i32) {
    %c0_i32 = arith.constant 0 : i32
    %c0_i32_0 = arith.constant 0 : i32
    return %arg0, %c0_i32 : i32, i32
  }
  func.func @transform_1(%arg0: i32) -> (i32, i32) {
    %c0_i32 = arith.constant 0 : i32
    %c0_i32_0 = arith.constant 0 : i32
    %c0_i32_1 = arith.constant 0 : i32
    return %c0_i32, %c0_i32_0 : i32, i32
  }
  func.func @transform_2(%arg0: i32) -> (i32, i32) {
    %c0_i32 = arith.constant 0 : i32
    %c0_i32_0 = arith.constant 0 : i32
    %c0_i32_1 = arith.constant 0 : i32
    return %c0_i32, %c0_i32_0 : i32, i32
  }
  func.func @transform_3(%arg0: i32) -> (i32, i32) {
    %c0_i32 = arith.constant 0 : i32
    %c0_i32_0 = arith.constant 0 : i32
    %c0_i32_1 = arith.constant 0 : i32
    return %c0_i32, %c0_i32_0 : i32, i32
  }
  func.func @transform_4(%arg0: i32) -> (i32, i32) {
    %c0_i32 = arith.constant 0 : i32
    %c0_i32_0 = arith.constant 0 : i32
    %c0_i32_1 = arith.constant 0 : i32
    return %c0_i32, %c0_i32_0 : i32, i32
  }
  func.func @transform_5(%arg0: i32) -> (i32, i32, i32) {
    %c0_i32 = arith.constant 0 : i32
    %c0_i32_0 = arith.constant 0 : i32
    %c0_i32_1 = arith.constant 0 : i32
    return %c0_i32, %arg0, %c0_i32_0 : i32, i32, i32
  }
}

</mosaic_0001>

<llo_original>
// kernel: adaptation_forward.1
$region0: #{adaptation_forward.1}
  #allocation0 [shape = 'u32[]', space=smem, size = 0x4, offset = 0x4, fixed_abs, tag = 'smem constant byte address 0x4 - core index']
  #allocation1 [shape = 'u32[144,128]{1,0:T(1,128)}', space=vmem, size = 0x12000, scoped, tag = 'internal scratch']
  %s0 = inlined_call_operand.vmem [shape: f32[8,128], index: 0, kind: input, shape index: {}]
  %s1 = inlined_call_operand.hbm [shape: f32[128,128], index: 1, kind: input, shape index: {}]
  %s2 = inlined_call_operand.vmem [shape: f32[1,128], index: 2, kind: input, shape index: {}]
  %s3 = inlined_call_operand.hbm [shape: f32[128,768], index: 3, kind: input, shape index: {}]
  %s4 = inlined_call_operand.vmem [shape: f32[1,768], index: 4, kind: input, shape index: {}]
  %s5 = inlined_call_operand.vmem [shape: f32[6,8,128], index: 5, kind: output, shape index: {}]
  %s6 = sld [smem:[#allocation0]]
  $region38: #{adaptation_forward.1} parent=0
    _
  %s8 = ssub.s32 1, %s6
  %s9 = scalar_select 0, %s8, %s6
  $region1: #{adaptation_forward.1} parent=0
    #allocation2 [shape = 'u8[65536]{0}', space=vmem, size = 0x10000, scoped, tag = 'input window, operand 1, single buffered']
    #allocation3 [shape = 's32[1]{0}', space=sflag, size = 0x4, scoped, tag = 'scoped memory for adaptation_forward.1']
    #allocation4 [shape = 'u8[393216]{0}', space=vmem, size = 0x60000, scoped, tag = 'input window, operand 3, single buffered']
    #allocation5 [shape = 's32[1]{0}', space=sflag, size = 0x4, scoped, tag = 'scoped memory for adaptation_forward.1']
    %10 = vsyncpa [#allocation3], 0
    %11 = vsyncpa [#allocation5], 0
    // Predicated region
    $region2: #{adaptation_forward.1} parent=1 // pred_check
      _
    $region3: #{adaptation_forward.1} parent=1 // pred_check_branch
      %13 = sbr.rel (0) target = $region5
    $region4: #{adaptation_forward.1} parent=1 // pred_region
      _
    $region5: #{adaptation_forward.1} parent=1 // pred_fallthru
      _
    // Predicated region
    $region6: #{adaptation_forward.1} parent=1 // pred_check
      _
    $region7: #{adaptation_forward.1} parent=1 // pred_check_branch
      %15 = sbr.rel (0) target = $region9
    $region8: #{adaptation_forward.1} parent=1 // pred_region
      %s17 = ssub.s32 2048, 2048
      %18 = vsyncadd [#allocation3], %s17
      %s19 = sshll.u32 [#allocation2], 4
      %s20 = int_to_ptr.vmem [resolvable:$true] %s19
      %25 = dma.hbm_to_vmem [thread:$0]  %s1, 2048, %s20, [#allocation3], 128, 128, 8
    $region9: #{adaptation_forward.1} parent=1 // pred_fallthru
      _
    // Predicated region
    $region10: #{adaptation_forward.1} parent=1 // pred_check
      _
    $region11: #{adaptation_forward.1} parent=1 // pred_check_branch
      %27 = sbr.rel (0) target = $region13
    $region12: #{adaptation_forward.1} parent=1 // pred_region
      _
    $region13: #{adaptation_forward.1} parent=1 // pred_fallthru
      _
    // Predicated region
    $region14: #{adaptation_forward.1} parent=1 // pred_check
      _
    $region15: #{adaptation_forward.1} parent=1 // pred_check_branch
      %29 = sbr.rel (0) target = $region17
    $region16: #{adaptation_forward.1} parent=1 // pred_region
      %s31 = ssub.s32 12288, 12288
      %32 = vsyncadd [#allocation5], %s31
      %s33 = sshll.u32 [#allocation4], 4
      %s34 = int_to_ptr.vmem [resolvable:$true] %s33
      %39 = dma.hbm_to_vmem [thread:$0]  %s3, 12288, %s34, [#allocation5], 768, 768, 48
    $region17: #{adaptation_forward.1} parent=1 // pred_fallthru
      _
    // Predicated region
    $region18: #{adaptation_forward.1} parent=1 // pred_check
      _
    $region19: #{adaptation_forward.1} parent=1 // pred_check_branch
      %41 = sbr.rel (0) target = $region21
    $region20: #{adaptation_forward.1} parent=1 // pred_region
      _
    $region21: #{adaptation_forward.1} parent=1 // pred_fallthru
      _
    // Predicated region
    $region22: #{adaptation_forward.1} parent=1 // pred_check
      _
    $region23: #{adaptation_forward.1} parent=1 // pred_check_branch
      %43 = sbr.rel (0) target = $region25
    $region24: #{adaptation_forward.1} parent=1 // pred_region
      %44 = dma.done [#allocation3], 2048
    $region25: #{adaptation_forward.1} parent=1 // pred_fallthru
      _
    // Predicated region
    $region26: #{adaptation_forward.1} parent=1 // pred_check
      _
    $region27: #{adaptation_forward.1} parent=1 // pred_check_branch
      %46 = sbr.rel (0) target = $region29
    $region28: #{adaptation_forward.1} parent=1 // pred_region
      %47 = dma.done [#allocation5], 12288
    $region29: #{adaptation_forward.1} parent=1 // pred_fallthru
      _
    %v48 = vld [vmem:[%s0] sm:$0xff]
    %v49 = vld [vmem:[#allocation2] sm:$0xff]
    %v50 = vld [vmem:[#allocation2 + $0x8] sm:$0xff]
    %v51 = vld [vmem:[#allocation2 + $0x10] sm:$0xff]
    %v52 = vld [vmem:[#allocation2 + $0x18] sm:$0xff]
    %v53 = vld [vmem:[#allocation2 + $0x20] sm:$0xff]
    %v54 = vld [vmem:[#allocation2 + $0x28] sm:$0xff]
    %v55 = vld [vmem:[#allocation2 + $0x30] sm:$0xff]
    %v56 = vld [vmem:[#allocation2 + $0x38] sm:$0xff]
    %v57 = vld [vmem:[#allocation2 + $0x40] sm:$0xff]
    %v58 = vld [vmem:[#allocation2 + $0x48] sm:$0xff]
    %v59 = vld [vmem:[#allocation2 + $0x50] sm:$0xff]
    %v60 = vld [vmem:[#allocation2 + $0x58] sm:$0xff]
    %v61 = vld [vmem:[#allocation2 + $0x60] sm:$0xff]
    %v62 = vld [vmem:[#allocation2 + $0x68] sm:$0xff]
    %v63 = vld [vmem:[#allocation2 + $0x70] sm:$0xff]
    %v64 = vld [vmem:[#allocation2 + $0x78] sm:$0xff]
    %v65 = vld [vmem:[%s2] sm:$0x1]
    %v67 = vlaneseq
    %v68 = vshrl.u32 %v67, 7
    %v69 = vsub.s32 0, %v68
    %v70 = vrot.slane %v65, %v69
    %72 = vmatprep.subr.mxu0 0.0
    %73 = vmatpush1.msra.mxu0 %v49
    %74 = vmatprep.subr.mxu0 0.0
    %75 = vmatpush1.msra.mxu0 %v50
    %76 = vmatprep.subr.mxu0 0.0
    %77 = vmatpush1.msra.mxu0 %v51
    %78 = vmatprep.subr.mxu0 0.0
    %79 = vmatpush1.msra.mxu0 %v52
    %80 = vmatprep.subr.mxu0 0.0
    %81 = vmatpush1.msra.mxu0 %v53
    %82 = vmatprep.subr.mxu0 0.0
    %83 = vmatpush1.msra.mxu0 %v54
    %84 = vmatprep.subr.mxu0 0.0
    %85 = vmatpush1.msra.mxu0 %v55
    %86 = vmatprep.subr.mxu0 0.0
    %87 = vmatpush1.msra.mxu0 %v56
    %88 = vmatprep.subr.mxu0 0.0
    %89 = vmatpush1.msra.mxu0 %v57
    %90 = vmatprep.subr.mxu0 0.0
    %91 = vmatpush1.msra.mxu0 %v58
    %92 = vmatprep.subr.mxu0 0.0
    %93 = vmatpush1.msra.mxu0 %v59
    %94 = vmatprep.subr.mxu0 0.0
    %95 = vmatpush1.msra.mxu0 %v60
    %96 = vmatprep.subr.mxu0 0.0
    %97 = vmatpush1.msra.mxu0 %v61
    %98 = vmatprep.subr.mxu0 0.0
    %99 = vmatpush1.msra.mxu0 %v62
    %100 = vmatprep.subr.mxu0 0.0
    %101 = vmatpush1.msra.mxu0 %v63
    %102 = vmatprep.subr.mxu0 0.0
    %103 = vmatpush1.msra.mxu0 %v64
    %104 = vmatprep.subr.mxu0 0.0
    %105 = vmatpush1.msra.mxu0 0.0
    %106 = vmatprep.subr.mxu0 0.0
    %107 = vmatpush1.msra.mxu0 0.0
    %108 = vmatprep.subr.mxu0 0.0
    %109 = vmatpush1.msra.mxu0 0.0
    %110 = vmatprep.subr.mxu0 0.0
    %111 = vmatpush1.msra.mxu0 0.0
    %112 = vmatprep.subr.mxu0 0.0
    %113 = vmatpush1.msra.mxu0 0.0
    %114 = vmatprep.subr.mxu0 0.0
    %115 = vmatpush1.msra.mxu0 0.0
    %116 = vmatprep.subr.mxu0 0.0
    %117 = vmatpush1.msra.mxu0 0.0
    %118 = vmatprep.subr.mxu0 0.0
    %119 = vmatpush1.msra.mxu0 0.0
    %120 = vmatprep.subr.mxu0 0.0
    %121 = vmatpush1.msra.mxu0 0.0
    %122 = vmatprep.subr.mxu0 0.0
    %123 = vmatpush1.msra.mxu0 0.0
    %124 = vmatprep.subr.mxu0 0.0
    %125 = vmatpush1.msra.mxu0 0.0
    %126 = vmatprep.subr.mxu0 0.0
    %127 = vmatpush1.msra.mxu0 0.0
    %128 = vmatprep.subr.mxu0 0.0
    %129 = vmatpush1.msra.mxu0 0.0
    %130 = vmatprep.subr.mxu0 0.0
    %131 = vmatpush1.msra.mxu0 0.0
    %132 = vmatprep.subr.mxu0 0.0
    %133 = vmatpush1.msra.mxu0 0.0
    %134 = vmatprep.subr.mxu0 0.0
    %135 = vmatpush1.msra.mxu0 0.0
    %136 = vmatprep.mubr.f32.mxu0 0.0
    %137 = vmatmul.mubr.f32.gmra.mrb[0].mxu0 %v48
    %v138 = vpop.f32.mrb[0].mxu0
    %v139 = vadd.f32 %v70, %v138
    %v140 = vpop.f32.mrb[0].mxu0
    %141 = vdwg.mxu0
    %v142 = vmax.f32 %v139, 0.0
    %v143 = vld [vmem:[#allocation4] sm:$0xff]
    %v144 = vld [vmem:[#allocation4 + $0x8] sm:$0xff]
    %v145 = vld [vmem:[#allocation4 + $0x10] sm:$0xff]
    %v146 = vld [vmem:[#allocation4 + $0x18] sm:$0xff]
    %v147 = vld [vmem:[#allocation4 + $0x20] sm:$0xff]
    %v148 = vld [vmem:[#allocation4 + $0x28] sm:$0xff]
    %v149 = vld [vmem:[#allocation4 + $0x30] sm:$0xff]
    %v150 = vld [vmem:[#allocation4 + $0x38] sm:$0xff]
    %v151 = vld [vmem:[#allocation4 + $0x40] sm:$0xff]
    %v152 = vld [vmem:[#allocation4 + $0x48] sm:$0xff]
    %v153 = vld [vmem:[#allocation4 + $0x50] sm:$0xff]
    %v154 = vld [vmem:[#allocation4 + $0x58] sm:$0xff]
    %v155 = vld [vmem:[#allocation4 + $0x60] sm:$0xff]
    %v156 = vld [vmem:[#allocation4 + $0x68] sm:$0xff]
    %v157 = vld [vmem:[#allocation4 + $0x70] sm:$0xff]
    %v158 = vld [vmem:[#allocation4 + $0x78] sm:$0xff]
    %v159 = vld [vmem:[#allocation4 + $0x80] sm:$0xff]
    %v160 = vld [vmem:[#allocation4 + $0x88] sm:$0xff]
    %v161 = vld [vmem:[#allocation4 + $0x90] sm:$0xff]
    %v162 = vld [vmem:[#allocation4 + $0x98] sm:$0xff]
    %v163 = vld [vmem:[#allocation4 + $0xa0] sm:$0xff]
    %v164 = vld [vmem:[#allocation4 + $0xa8] sm:$0xff]
    %v165 = vld [vmem:[#allocation4 + $0xb0] sm:$0xff]
    %v166 = vld [vmem:[#allocation4 + $0xb8] sm:$0xff]
    %v167 = vld [vmem:[#allocation4 + $0xc0] sm:$0xff]
    %v168 = vld [vmem:[#allocation4 + $0xc8] sm:$0xff]
    %v169 = vld [vmem:[#allocation4 + $0xd0] sm:$0xff]
    %v170 = vld [vmem:[#allocation4 + $0xd8] sm:$0xff]
    %v171 = vld [vmem:[#allocation4 + $0xe0] sm:$0xff]
    %v172 = vld [vmem:[#allocation4 + $0xe8] sm:$0xff]
    %v173 = vld [vmem:[#allocation4 + $0xf0] sm:$0xff]
    %v174 = vld [vmem:[#allocation4 + $0xf8] sm:$0xff]
    %v175 = vld [vmem:[#allocation4 + $0x100] sm:$0xff]
    %v176 = vld [vmem:[#allocation4 + $0x108] sm:$0xff]
    %v177 = vld [vmem:[#allocation4 + $0x110] sm:$0xff]
    %v178 = vld [vmem:[#allocation4 + $0x118] sm:$0xff]
    %v179 = vld [vmem:[#allocation4 + $0x120] sm:$0xff]
    %v180 = vld [vmem:[#allocation4 + $0x128] sm:$0xff]
    %v181 = vld [vmem:[#allocation4 + $0x130] sm:$0xff]
    %v182 = vld [vmem:[#allocation4 + $0x138] sm:$0xff]
    %v183 = vld [vmem:[#allocation4 + $0x140] sm:$0xff]
    %v184 = vld [vmem:[#allocation4 + $0x148] sm:$0xff]
    %v185 = vld [vmem:[#allocation4 + $0x150] sm:$0xff]
    %v186 = vld [vmem:[#allocation4 + $0x158] sm:$0xff]
    %v187 = vld [vmem:[#allocation4 + $0x160] sm:$0xff]
    %v188 = vld [vmem:[#allocation4 + $0x168] sm:$0xff]
    %v189 = vld [vmem:[#allocation4 + $0x170] sm:$0xff]
    %v190 = vld [vmem:[#allocation4 + $0x178] sm:$0xff]
    %v191 = vld [vmem:[#allocation4 + $0x180] sm:$0xff]
    %v192 = vld [vmem:[#allocation4 + $0x188] sm:$0xff]
    %v193 = vld [vmem:[#allocation4 + $0x190] sm:$0xff]
    %v194 = vld [vmem:[#allocation4 + $0x198] sm:$0xff]
    %v195 = vld [vmem:[#allocation4 + $0x1a0] sm:$0xff]
    %v196 = vld [vmem:[#allocation4 + $0x1a8] sm:$0xff]
    %v197 = vld [vmem:[#allocation4 + $0x1b0] sm:$0xff]
    %v198 = vld [vmem:[#allocation4 + $0x1b8] sm:$0xff]
    %v199 = vld [vmem:[#allocation4 + $0x1c0] sm:$0xff]
    %v200 = vld [vmem:[#allocation4 + $0x1c8] sm:$0xff]
    %v201 = vld [vmem:[#allocation4 + $0x1d0] sm:$0xff]
    %v202 = vld [vmem:[#allocation4 + $0x1d8] sm:$0xff]
    %v203 = vld [vmem:[#allocation4 + $0x1e0] sm:$0xff]
    %v204 = vld [vmem:[#allocation4 + $0x1e8] sm:$0xff]
    %v205 = vld [vmem:[#allocation4 + $0x1f0] sm:$0xff]
    %v206 = vld [vmem:[#allocation4 + $0x1f8] sm:$0xff]
    %v207 = vld [vmem:[#allocation4 + $0x200] sm:$0xff]
    %v208 = vld [vmem:[#allocation4 + $0x208] sm:$0xff]
    %v209 = vld [vmem:[#allocation4 + $0x210] sm:$0xff]
    %v210 = vld [vmem:[#allocation4 + $0x218] sm:$0xff]
    %v211 = vld [vmem:[#allocation4 + $0x220] sm:$0xff]
    %v212 = vld [vmem:[#allocation4 + $0x228] sm:$0xff]
    %v213 = vld [vmem:[#allocation4 + $0x230] sm:$0xff]
    %v214 = vld [vmem:[#allocation4 + $0x238] sm:$0xff]
    %v215 = vld [vmem:[#allocation4 + $0x240] sm:$0xff]
    %v216 = vld [vmem:[#allocation4 + $0x248] sm:$0xff]
    %v217 = vld [vmem:[#allocation4 + $0x250] sm:$0xff]
    %v218 = vld [vmem:[#allocation4 + $0x258] sm:$0xff]
    %v219 = vld [vmem:[#allocation4 + $0x260] sm:$0xff]
    %v220 = vld [vmem:[#allocation4 + $0x268] sm:$0xff]
    %v221 = vld [vmem:[#allocation4 + $0x270] sm:$0xff]
    %v222 = vld [vmem:[#allocation4 + $0x278] sm:$0xff]
    %v223 = vld [vmem:[#allocation4 + $0x280] sm:$0xff]
    %v224 = vld [vmem:[#allocation4 + $0x288] sm:$0xff]
    %v225 = vld [vmem:[#allocation4 + $0x290] sm:$0xff]
    %v226 = vld [vmem:[#allocation4 + $0x298] sm:$0xff]
    %v227 = vld [vmem:[#allocation4 + $0x2a0] sm:$0xff]
    %v228 = vld [vmem:[#allocation4 + $0x2a8] sm:$0xff]
    %v229 = vld [vmem:[#allocation4 + $0x2b0] sm:$0xff]
    %v230 = vld [vmem:[#allocation4 + $0x2b8] sm:$0xff]
    %v231 = vld [vmem:[#allocation4 + $0x2c0] sm:$0xff]
    %v232 = vld [vmem:[#allocation4 + $0x2c8] sm:$0xff]
    %v233 = vld [vmem:[#allocation4 + $0x2d0] sm:$0xff]
    %v234 = vld [vmem:[#allocation4 + $0x2d8] sm:$0xff]
    %v235 = vld [vmem:[#allocation4 + $0x2e0] sm:$0xff]
    %v236 = vld [vmem:[#allocation4 + $0x2e8] sm:$0xff]
    %v237 = vld [vmem:[#allocation4 + $0x2f0] sm:$0xff]
    %v238 = vld [vmem:[#allocation4 + $0x2f8] sm:$0xff]
    %v239 = vld [vmem:[%s4] sm:$0x3f]
    %v241 = vlaneseq
    %v242 = vshrl.u32 %v241, 7
    %v243 = vsub.s32 0, %v242
    %v244 = vrot.slane %v239, %v243
    %v245 = vlaneseq
    %v246 = vshrl.u32 %v245, 7
    %v247 = vsub.s32 1, %v246
    %v248 = vrot.slane %v239, %v247
    %v249 = vlaneseq
    %v250 = vshrl.u32 %v249, 7
    %v251 = vsub.s32 2, %v250
    %v252 = vrot.slane %v239, %v251
    %v253 = vlaneseq
    %v254 = vshrl.u32 %v253, 7
    %v255 = vsub.s32 3, %v254
    %v256 = vrot.slane %v239, %v255
    %v257 = vlaneseq
    %v258 = vshrl.u32 %v257, 7
    %v259 = vsub.s32 4, %v258
    %v260 = vrot.slane %v239, %v259
    %v261 = vlaneseq
    %v262 = vshrl.u32 %v261, 7
    %v263 = vsub.s32 5, %v262
    %v264 = vrot.slane %v239, %v263
    %271 = vmatprep.subr.mxu0 %v144
    %272 = vmatpush1.msra.mxu0 %v143
    %273 = vmatprep.subr.mxu0 %v150
    %274 = vmatpush1.msra.mxu0 %v149
    %275 = vmatprep.subr.mxu0 %v156
    %276 = vmatpush1.msra.mxu0 %v155
    %277 = vmatprep.subr.mxu0 %v162
    %278 = vmatpush1.msra.mxu0 %v161
    %279 = vmatprep.subr.mxu0 %v168
    %280 = vmatpush1.msra.mxu0 %v167
    %281 = vmatprep.subr.mxu0 %v174
    %282 = vmatpush1.msra.mxu0 %v173
    %283 = vmatprep.subr.mxu0 %v180
    %284 = vmatpush1.msra.mxu0 %v179
    %285 = vmatprep.subr.mxu0 %v186
    %286 = vmatpush1.msra.mxu0 %v185
    %287 = vmatprep.subr.mxu0 %v192
    %288 = vmatpush1.msra.mxu0 %v191
    %289 = vmatprep.subr.mxu0 %v198
    %290 = vmatpush1.msra.mxu0 %v197
    %291 = vmatprep.subr.mxu0 %v204
    %292 = vmatpush1.msra.mxu0 %v203
    %293 = vmatprep.subr.mxu0 %v210
    %294 = vmatpush1.msra.mxu0 %v209
    %295 = vmatprep.subr.mxu0 %v216
    %296 = vmatpush1.msra.mxu0 %v215
    %297 = vmatprep.subr.mxu0 %v222
    %298 = vmatpush1.msra.mxu0 %v221
    %299 = vmatprep.subr.mxu0 %v228
    %300 = vmatpush1.msra.mxu0 %v227
    %301 = vmatprep.subr.mxu0 %v234
    %302 = vmatpush1.msra.mxu0 %v233
    %303 = vmatprep.subr.mxu0 0.0
    %304 = vmatpush1.msra.mxu0 0.0
    %305 = vmatprep.subr.mxu0 0.0
    %306 = vmatpush1.msra.mxu0 0.0
    %307 = vmatprep.subr.mxu0 0.0
    %308 = vmatpush1.msra.mxu0 0.0
    %309 = vmatprep.subr.mxu0 0.0
    %310 = vmatpush1.msra.mxu0 0.0
    %311 = vmatprep.subr.mxu0 0.0
    %312 = vmatpush1.msra.mxu0 0.0
    %313 = vmatprep.subr.mxu0 0.0
    %314 = vmatpush1.msra.mxu0 0.0
    %315 = vmatprep.subr.mxu0 0.0
    %316 = vmatpush1.msra.mxu0 0.0
    %317 = vmatprep.subr.mxu0 0.0
    %318 = vmatpush1.msra.mxu0 0.0
    %319 = vmatprep.subr.mxu0 0.0
    %320 = vmatpush1.msra.mxu0 0.0
    %321 = vmatprep.subr.mxu0 0.0
    %322 = vmatpush1.msra.mxu0 0.0
    %323 = vmatprep.subr.mxu0 0.0
    %324 = vmatpush1.msra.mxu0 0.0
    %325 = vmatprep.subr.mxu0 0.0
    %326 = vmatpush1.msra.mxu0 0.0
    %327 = vmatprep.subr.mxu0 0.0
    %328 = vmatpush1.msra.mxu0 0.0
    %329 = vmatprep.subr.mxu0 0.0
    %330 = vmatpush1.msra.mxu0 0.0
    %331 = vmatprep.subr.mxu0 0.0
    %332 = vmatpush1.msra.mxu0 0.0
    %333 = vmatprep.subr.mxu0 0.0
    %334 = vmatpush1.msra.mxu0 0.0
    %335 = vmatprep.mubr.f32.mxu0 0.0
    %336 = vmatmul.mubr.f32.gmra.mrb[0].mxu0 %v142
    %v337 = vpop.f32.mrb[0].mxu0
    %v338 = vadd.f32 %v244, %v337
    %v339 = vpop.f32.mrb[0].mxu0
    %v340 = vadd.f32 %v248, %v339
    %341 = vdwg.mxu0
    %342 = vmatprep.subr.mxu0 %v146
    %343 = vmatpush1.msra.mxu0 %v145
    %344 = vmatprep.subr.mxu0 %v152
    %345 = vmatpush1.msra.mxu0 %v151
    %346 = vmatprep.subr.mxu0 %v158
    %347 = vmatpush1.msra.mxu0 %v157
    %348 = vmatprep.subr.mxu0 %v164
    %349 = vmatpush1.msra.mxu0 %v163
    %350 = vmatprep.subr.mxu0 %v170
    %351 = vmatpush1.msra.mxu0 %v169
    %352 = vmatprep.subr.mxu0 %v176
    %353 = vmatpush1.msra.mxu0 %v175
    %354 = vmatprep.subr.mxu0 %v182
    %355 = vmatpush1.msra.mxu0 %v181
    %356 = vmatprep.subr.mxu0 %v188
    %357 = vmatpush1.msra.mxu0 %v187
    %358 = vmatprep.subr.mxu0 %v194
    %359 = vmatpush1.msra.mxu0 %v193
    %360 = vmatprep.subr.mxu0 %v200
    %361 = vmatpush1.msra.mxu0 %v199
    %362 = vmatprep.subr.mxu0 %v206
    %363 = vmatpush1.msra.mxu0 %v205
    %364 = vmatprep.subr.mxu0 %v212
    %365 = vmatpush1.msra.mxu0 %v211
    %366 = vmatprep.subr.mxu0 %v218
    %367 = vmatpush1.msra.mxu0 %v217
    %368 = vmatprep.subr.mxu0 %v224
    %369 = vmatpush1.msra.mxu0 %v223
    %370 = vmatprep.subr.mxu0 %v230
    %371 = vmatpush1.msra.mxu0 %v229
    %372 = vmatprep.subr.mxu0 %v236
    %373 = vmatpush1.msra.mxu0 %v235
    %374 = vmatprep.subr.mxu0 0.0
    %375 = vmatpush1.msra.mxu0 0.0
    %376 = vmatprep.subr.mxu0 0.0
    %377 = vmatpush1.msra.mxu0 0.0
    %378 = vmatprep.subr.mxu0 0.0
    %379 = vmatpush1.msra.mxu0 0.0
    %380 = vmatprep.subr.mxu0 0.0
    %381 = vmatpush1.msra.mxu0 0.0
    %382 = vmatprep.subr.mxu0 0.0
    %383 = vmatpush1.msra.mxu0 0.0
    %384 = vmatprep.subr.mxu0 0.0
    %385 = vmatpush1.msra.mxu0 0.0
    %386 = vmatprep.subr.mxu0 0.0
    %387 = vmatpush1.msra.mxu0 0.0
    %388 = vmatprep.subr.mxu0 0.0
    %389 = vmatpush1.msra.mxu0 0.0
    %390 = vmatprep.subr.mxu0 0.0
    %391 = vmatpush1.msra.mxu0 0.0
    %392 = vmatprep.subr.mxu0 0.0
    %393 = vmatpush1.msra.mxu0 0.0
    %394 = vmatprep.subr.mxu0 0.0
    %395 = vmatpush1.msra.mxu0 0.0
    %396 = vmatprep.subr.mxu0 0.0
    %397 = vmatpush1.msra.mxu0 0.0
    %398 = vmatprep.subr.mxu0 0.0
    %399 = vmatpush1.msra.mxu0 0.0
    %400 = vmatprep.subr.mxu0 0.0
    %401 = vmatpush1.msra.mxu0 0.0
    %402 = vmatprep.subr.mxu0 0.0
    %403 = vmatpush1.msra.mxu0 0.0
    %404 = vmatprep.subr.mxu0 0.0
    %405 = vmatpush1.msra.mxu0 0.0
    %406 = vmatprep.mubr.f32.mxu0 0.0
    %407 = vmatmul.mubr.f32.gmra.mrb[0].mxu0 %v142
    %v408 = vpop.f32.mrb[0].mxu0
    %v409 = vadd.f32 %v252, %v408
    %v410 = vpop.f32.mrb[0].mxu0
    %v411 = vadd.f32 %v256, %v410
    %412 = vdwg.mxu0
    %413 = vmatprep.subr.mxu0 %v148
    %414 = vmatpush1.msra.mxu0 %v147
    %415 = vmatprep.subr.mxu0 %v154
    %416 = vmatpush1.msra.mxu0 %v153
    %417 = vmatprep.subr.mxu0 %v160
    %418 = vmatpush1.msra.mxu0 %v159
    %419 = vmatprep.subr.mxu0 %v166
    %420 = vmatpush1.msra.mxu0 %v165
    %421 = vmatprep.subr.mxu0 %v172
    %422 = vmatpush1.msra.mxu0 %v171
    %423 = vmatprep.subr.mxu0 %v178
    %424 = vmatpush1.msra.mxu0 %v177
    %425 = vmatprep.subr.mxu0 %v184
    %426 = vmatpush1.msra.mxu0 %v183
    %427 = vmatprep.subr.mxu0 %v190
    %428 = vmatpush1.msra.mxu0 %v189
    %429 = vmatprep.subr.mxu0 %v196
    %430 = vmatpush1.msra.mxu0 %v195
    %431 = vmatprep.subr.mxu0 %v202
    %432 = vmatpush1.msra.mxu0 %v201
    %433 = vmatprep.subr.mxu0 %v208
    %434 = vmatpush1.msra.mxu0 %v207
    %435 = vmatprep.subr.mxu0 %v214
    %436 = vmatpush1.msra.mxu0 %v213
    %437 = vmatprep.subr.mxu0 %v220
    %438 = vmatpush1.msra.mxu0 %v219
    %439 = vmatprep.subr.mxu0 %v226
    %440 = vmatpush1.msra.mxu0 %v225
    %441 = vmatprep.subr.mxu0 %v232
    %442 = vmatpush1.msra.mxu0 %v231
    %443 = vmatprep.subr.mxu0 %v238
    %444 = vmatpush1.msra.mxu0 %v237
    %445 = vmatprep.subr.mxu0 0.0
    %446 = vmatpush1.msra.mxu0 0.0
    %447 = vmatprep.subr.mxu0 0.0
    %448 = vmatpush1.msra.mxu0 0.0
    %449 = vmatprep.subr.mxu0 0.0
    %450 = vmatpush1.msra.mxu0 0.0
    %451 = vmatprep.subr.mxu0 0.0
    %452 = vmatpush1.msra.mxu0 0.0
    %453 = vmatprep.subr.mxu0 0.0
    %454 = vmatpush1.msra.mxu0 0.0
    %455 = vmatprep.subr.mxu0 0.0
    %456 = vmatpush1.msra.mxu0 0.0
    %457 = vmatprep.subr.mxu0 0.0
    %458 = vmatpush1.msra.mxu0 0.0
    %459 = vmatprep.subr.mxu0 0.0
    %460 = vmatpush1.msra.mxu0 0.0
    %461 = vmatprep.subr.mxu0 0.0
    %462 = vmatpush1.msra.mxu0 0.0
    %463 = vmatprep.subr.mxu0 0.0
    %464 = vmatpush1.msra.mxu0 0.0
    %465 = vmatprep.subr.mxu0 0.0
    %466 = vmatpush1.msra.mxu0 0.0
    %467 = vmatprep.subr.mxu0 0.0
    %468 = vmatpush1.msra.mxu0 0.0
    %469 = vmatprep.subr.mxu0 0.0
    %470 = vmatpush1.msra.mxu0 0.0
    %471 = vmatprep.subr.mxu0 0.0
    %472 = vmatpush1.msra.mxu0 0.0
    %473 = vmatprep.subr.mxu0 0.0
    %474 = vmatpush1.msra.mxu0 0.0
    %475 = vmatprep.subr.mxu0 0.0
    %476 = vmatpush1.msra.mxu0 0.0
    %477 = vmatprep.mubr.f32.mxu0 0.0
    %478 = vmatmul.mubr.f32.gmra.mrb[0].mxu0 %v142
    %v479 = vpop.f32.mrb[0].mxu0
    %v480 = vadd.f32 %v260, %v479
    %v481 = vpop.f32.mrb[0].mxu0
    %v482 = vadd.f32 %v264, %v481
    %483 = vdwg.mxu0
    %484 = vst [vmem:[%s5] sm:$0xff] %v338
    %s485 = scalar_lea.vmem %s5, 8
    %486 = vst [vmem:[%s485] sm:$0xff] %v340
    %s487 = scalar_lea.vmem %s5, 16
    %488 = vst [vmem:[%s487] sm:$0xff] %v409
    %s489 = scalar_lea.vmem %s5, 24
    %490 = vst [vmem:[%s489] sm:$0xff] %v411
    %s491 = scalar_lea.vmem %s5, 32
    %492 = vst [vmem:[%s491] sm:$0xff] %v480
    %s493 = scalar_lea.vmem %s5, 40
    %494 = vst [vmem:[%s493] sm:$0xff] %v482
    // Predicated region
    $region30: #{adaptation_forward.1} parent=1 // pred_check
      _
    $region31: #{adaptation_forward.1} parent=1 // pred_check_branch
      %496 = sbr.rel (0) target = $region33
    $region32: #{adaptation_forward.1} parent=1 // pred_region
      _
    $region33: #{adaptation_forward.1} parent=1 // pred_fallthru
      _
    // Predicated region
    $region34: #{adaptation_forward.1} parent=1 // pred_check
      _
    $region35: #{adaptation_forward.1} parent=1 // pred_check_branch
      %498 = sbr.rel (0) target = $region37
    $region36: #{adaptation_forward.1} parent=1 // pred_region
      _
    $region37: #{adaptation_forward.1} parent=1 // pred_fallthru
      _
    %499 = vsyncpa [#allocation3], 1
    %500 = vsyncpa [#allocation5], 1

</llo_original>
